<compile_context>
chip_gen: v7x
topology: tpu7x:2x2x1
jax: 0.10.0
libtpu: 0.0.40
codegen_flags: <defaults>
</compile_context>

<pallas_src>
import numpy as np
import jax
import jax.numpy as jnp
from jax.experimental import pallas as pl
from jax.experimental.pallas import tpu as pltpu

# ---- synthetic irreps config (typical SelfConnectionIntro instantiation) ----
# irreps_x       = "8x0e + 8x1o"   (node features)
# irreps_operand = "4x0e"          (node attr: one-hot of 4 species)
# irreps_out     = "8x0e + 8x1o"
IRREPS_X   = [(8, 0), (8, 1)]     # (mul, l)
IRREPS_OP  = [(4, 0)]
IRREPS_OUT = [(8, 0), (8, 1)]


def _irreps_dim(irreps):
    return sum(mul * (2 * l + 1) for mul, l in irreps)


DX   = _irreps_dim(IRREPS_X)      # 32
DY   = _irreps_dim(IRREPS_OP)     # 4
DOUT = _irreps_dim(IRREPS_OUT)    # 32

PACK = 4                          # nodes packed per 128-lane row
assert PACK * DX == 128 and PACK * DOUT == 128
ZCOLS = PACK * DY * DX            # 512 : contraction depth of the fused matmul


def _round_up(a, b):
    return ((a + b - 1) // b) * b


def build_fused_weight(key):
    """Builds W3[j, i, k] = sum_paths coeff * weight[u,v,w] * wigner3j, so that
    out[n,k] = sum_{i,j} x[n,i] y[n,j] W3[j,i,k] reproduces e3nn's
    FullyConnectedTensorProduct forward with internal weights ~ N(0,1)."""
    offs_x = np.cumsum([0] + [m * (2 * l + 1) for m, l in IRREPS_X])
    offs_y = np.cumsum([0] + [m * (2 * l + 1) for m, l in IRREPS_OP])
    offs_o = np.cumsum([0] + [m * (2 * l + 1) for m, l in IRREPS_OUT])

    # FullyConnectedTensorProduct instructions: every (i1, i2, i_out) with
    # l_out in l1 (x) l2 and matching parity.  Operand here is scalars (l2=0),
    # so only l_out == l1 paths exist; real-basis wigner_3j(l,0,l) = I/sqrt(2l+1).
    # TODO(synk): operands with l2 > 0 would need general real-basis wigner_3j tables.
    instructions = []
    for i1, (mul1, l1) in enumerate(IRREPS_X):
        for i2, (mul2, l2) in enumerate(IRREPS_OP):
            for io, (mulo, lo) in enumerate(IRREPS_OUT):
                if l2 == 0 and lo == l1:
                    instructions.append((i1, i2, io, mul1, mul2, mulo, l1))

    # e3nn defaults: irrep_normalization='component', path_normalization='element'
    fan = {}
    for (_, _, io, mul1, mul2, _, _) in instructions:
        fan[io] = fan.get(io, 0.0) + mul1 * mul2

    W3 = np.zeros((DY, DX, DOUT), np.float32)
    for (i1, i2, io, mul1, mul2, mulo, l) in instructions:
        key, sub = jax.random.split(key)
        w = np.asarray(jax.random.normal(sub, (mul1, mul2, mulo), jnp.float32))
        alpha = (2 * l + 1) / fan[io]            # component / element normalization
        w3j_diag = 1.0 / np.sqrt(2 * l + 1)      # wigner_3j(l, 0, l) diagonal value
        coeff = np.sqrt(alpha) * w3j_diag        # == 1/sqrt(fan)
        d = 2 * l + 1
        for u in range(mul1):
            for v in range(mul2):
                for wo in range(mulo):
                    xi0 = offs_x[i1] + u * d
                    ok0 = offs_o[io] + wo * d
                    yj = offs_y[i2] + v
                    for m in range(d):
                        W3[yj, xi0 + m, ok0 + m] += coeff * w[u, v, wo]
    return jnp.asarray(W3)


# ----------------------- constant selector / weight blocks -------------------
# TX[p*DX+i, p*128 + j*DX + i] = 1   (expands x to all DY operand slots)
_T0 = np.tile(np.eye(DX, dtype=np.float32), (1, DY))                  # (32, 128)
_TX = np.kron(np.eye(PACK, dtype=np.float32), _T0)                    # (128, 512)
# TY[p*DY+j, p*128 + j*DX + i] = 1   (broadcasts y[.,j] over the 32 x-lanes)
_TY0 = np.kron(np.eye(DY, dtype=np.float32), np.ones((1, DX), np.float32))  # (4, 128)
_TY = np.kron(np.eye(PACK, dtype=np.float32), _TY0)                   # (16, 512)


def _packed_weight(w3):
    """Block-diagonal (512,128) weight: WBLK[p*128+c, p*32+k] = w3.reshape(128,32)[c,k]."""
    w2 = w3.reshape(DY * DX, DOUT)
    return jnp.kron(jnp.eye(PACK, dtype=w2.dtype), w2)


# ---------------------------- Pallas kernel ----------------------------------
def fctp_kernel(xp_ref, yp_ref, tx_ref, ty_ref, w_ref, o_ref):
    # xp: (TNr, 128)  4 nodes / row, 32 lanes each
    # yp: (TNr, 16)   4 nodes / row, 4 lanes each
    # tx: (128, 512)  ty: (16, 512)  w: (512, 128)   o: (TNr, 128)
    #
    # Build z[r, 128*p + 32*j + i] = x[4r+p, i] * y[4r+p, j] with two matmuls
    # against constant 0/1 selector matrices (MXU is nearly idle here), leaving
    # a single full-vreg vmul -- no per-column broadcasts / lane concats.
    x_exp = jnp.dot(xp_ref[...], tx_ref[...], preferred_element_type=jnp.float32)
    y_exp = jnp.dot(yp_ref[...], ty_ref[...], preferred_element_type=jnp.float32)
    z = x_exp * y_exp                                          # (TNr, 512)
    # Block-diagonal weight: full K=512 contraction, 128-lane output row
    # (4 nodes x 32 channels) -> unmasked full-width stores, lane-dense HBM.
    o_ref[...] = jnp.dot(z, w_ref[...],
                         preferred_element_type=jnp.float32).astype(o_ref.dtype)


def fctp(x, y, w3, *, tile_n=2048):
    """out[n,k] = sum_{i,j} x[n,i] y[n,j] w3[j,i,k], tiled over nodes."""
    n = x.shape[0]
    assert x.shape[1] == DX and y.shape[1] == DY

    # Tile sizing: multiple of PACK*8 = 32 so the packed block (tile_n//4, 128)
    # meets the (8,128) constraint; capped at ~n/4 so the grid has >= 2
    # (target ~4) "parallel" steps and both v7x TensorCores get work.
    step = PACK * 8
    want = min(int(tile_n), _round_up(pl.cdiv(n, 4), step))
    tile_n = max(step, (want // step) * step)
    n_pad = pl.cdiv(n, tile_n) * tile_n
    if n_pad != n:
        x = jnp.pad(x, ((0, n_pad - n), (0, 0)))
        y = jnp.pad(y, ((0, n_pad - n), (0, 0)))

    # Free row-major repacks: 4 nodes per 128-lane row for x / out, 4 nodes per
    # 16-lane row for y (4x less lane padding than the old (TN, 4) block).
    nr = n_pad // PACK
    xp = x.reshape(nr, PACK * DX)        # (nr, 128)
    yp = y.reshape(nr, PACK * DY)        # (nr, 16)
    tnr = tile_n // PACK

    tx = jnp.asarray(_TX)
    ty = jnp.asarray(_TY)
    wblk = _packed_weight(w3)

    out_packed = pl.pallas_call(
        fctp_kernel,
        out_shape=jax.ShapeDtypeStruct((nr, PACK * DOUT), x.dtype),
        grid_spec=pltpu.PrefetchScalarGridSpec(
            num_scalar_prefetch=0,
            grid=(nr // tnr,),
            in_specs=[
                pl.BlockSpec((tnr, PACK * DX), lambda i: (i, 0)),
                pl.BlockSpec((tnr, PACK * DY), lambda i: (i, 0)),
                # Constant index_maps: the ~0.5 MiB of selectors + weight stay
                # resident in VMEM; the pipeline does not re-fetch them.
                pl.BlockSpec((PACK * DX, ZCOLS), lambda i: (0, 0)),
                pl.BlockSpec((PACK * DY, ZCOLS), lambda i: (0, 0)),
                pl.BlockSpec((ZCOLS, PACK * DOUT), lambda i: (0, 0)),
            ],
            out_specs=pl.BlockSpec((tnr, PACK * DOUT), lambda i: (i, 0)),
        ),
        compiler_params=pltpu.CompilerParams(
            dimension_semantics=("parallel",)),
    )(xp, yp, tx, ty, wblk)

    return out_packed.reshape(n_pad, DOUT)[:n]


def self_connection_intro(data, w3, **kwargs):
    """Mirrors the module's forward: writes the TP result into the data dict."""
    data = dict(data)
    data["self_connection_temp"] = fctp(
        data["node_feature"], data["node_attr"], w3, **kwargs)
    return data


if __name__ == "__main__":
    key = jax.random.PRNGKey(0)
    k_w, k_x, k_s, k_x2, k_y2 = jax.random.split(key, 5)

    w3 = build_fused_weight(k_w)

    # Case 1: small, ragged node count with one-hot species attr (HIENet use).
    n_nodes = 37
    x = jax.random.normal(k_x, (n_nodes, DX), jnp.float32)           # node features
    species = jax.random.randint(k_s, (n_nodes,), 0, DY)
    y = jax.nn.one_hot(species, DY, dtype=jnp.float32)               # node attr (one-hot)
    data = {"node_feature": x, "node_attr": y}
    out = jax.block_until_ready(
        self_connection_intro(data, w3)["self_connection_temp"])
    ref = jnp.einsum("ni,nj,jik->nk", x, y, w3,
                     precision=jax.lax.Precision.HIGHEST)
    assert out.shape == (n_nodes, DOUT)
    np.testing.assert_allclose(np.asarray(out), np.asarray(ref),
                               rtol=2e-4, atol=2e-4)

    # Case 2: larger node count + dense (non-one-hot) attr -> exercises the
    # general bilinear path and a multi-step grid.
    n_nodes2 = 1000
    x2 = jax.random.normal(k_x2, (n_nodes2, DX), jnp.float32)
    y2 = jax.random.normal(k_y2, (n_nodes2, DY), jnp.float32)
    out2 = jax.block_until_ready(fctp(x2, y2, w3))
    ref2 = jnp.einsum("ni,nj,jik->nk", x2, y2, w3,
                      precision=jax.lax.Precision.HIGHEST)
    np.testing.assert_allclose(np.asarray(out2), np.asarray(ref2),
                               rtol=2e-4, atol=2e-4)

    print("KERNEL_OK")
</pallas_src>

<mosaic_0001>
module attributes {stable_mosaic.version = 11 : i64} {
  func.func @fctp_kernel(%arg0: i32, %arg1: memref<8x128xf32, #tpu.memory_space<vmem>>, %arg2: memref<8x16xf32, #tpu.memory_space<vmem>>, %arg3: memref<128x512xf32, #tpu.memory_space<vmem>>, %arg4: memref<16x512xf32, #tpu.memory_space<vmem>>, %arg5: memref<512x128xf32, #tpu.memory_space<vmem>>, %arg6: memref<8x128xf32, #tpu.memory_space<vmem>>) attributes {dimension_semantics = [#tpu.dimension_semantics<parallel>], iteration_bounds = array<i64: 2>, scalar_prefetch = 0 : i64, scratch_operands = 0 : i64, tpu.core_type = #tpu.core_type<tc>, window_params = [{transform_indices = @transform_0, window_bounds = array<i64: 8, 128>}, {transform_indices = @transform_1, window_bounds = array<i64: 8, 16>}, {pipeline_mode = #tpu.pipeline_mode<synchronous>, transform_indices = @transform_2, window_bounds = array<i64: 128, 512>}, {pipeline_mode = #tpu.pipeline_mode<synchronous>, transform_indices = @transform_3, window_bounds = array<i64: 16, 512>}, {pipeline_mode = #tpu.pipeline_mode<synchronous>, transform_indices = @transform_4, window_bounds = array<i64: 512, 128>}, {transform_indices = @transform_5, window_bounds = array<i64: 8, 128>}]} {
    %c0 = arith.constant 0 : index
    %c0_0 = arith.constant 0 : index
    %0 = vector.load %arg1[%c0, %c0_0] : memref<8x128xf32, #tpu.memory_space<vmem>>, vector<8x128xf32>
    %c0_1 = arith.constant 0 : index
    %c0_2 = arith.constant 0 : index
    %1 = vector.load %arg3[%c0_1, %c0_2] : memref<128x512xf32, #tpu.memory_space<vmem>>, vector<128x512xf32>
    %cst = arith.constant dense<0.000000e+00> : vector<8x512xf32>
    %2 = tpu.matmul %0, %1, %cst {dimension_numbers = #tpu.dot_dimension_numbers<[1], [0], [0], [1], [0, 0, 1, 1], [], []>} : vector<8x128xf32>, vector<128x512xf32>, vector<8x512xf32> -> vector<8x512xf32>
    %c0_3 = arith.constant 0 : index
    %c0_4 = arith.constant 0 : index
    %3 = vector.load %arg2[%c0_3, %c0_4] : memref<8x16xf32, #tpu.memory_space<vmem>>, vector<8x16xf32>
    %c0_5 = arith.constant 0 : index
    %c0_6 = arith.constant 0 : index
    %4 = vector.load %arg4[%c0_5, %c0_6] : memref<16x512xf32, #tpu.memory_space<vmem>>, vector<16x512xf32>
    %cst_7 = arith.constant dense<0.000000e+00> : vector<8x512xf32>
    %5 = tpu.matmul %3, %4, %cst_7 {dimension_numbers = #tpu.dot_dimension_numbers<[1], [0], [0], [1], [0, 0, 1, 1], [], []>} : vector<8x16xf32>, vector<16x512xf32>, vector<8x512xf32> -> vector<8x512xf32>
    %6 = arith.mulf %2, %5 : vector<8x512xf32>
    %c0_8 = arith.constant 0 : index
    %c0_9 = arith.constant 0 : index
    %7 = vector.load %arg5[%c0_8, %c0_9] : memref<512x128xf32, #tpu.memory_space<vmem>>, vector<512x128xf32>
    %cst_10 = arith.constant dense<0.000000e+00> : vector<8x128xf32>
    %8 = tpu.matmul %6, %7, %cst_10 {dimension_numbers = #tpu.dot_dimension_numbers<[1], [0], [0], [1], [0, 0, 1, 1], [], []>} : vector<8x512xf32>, vector<512x128xf32>, vector<8x128xf32> -> vector<8x128xf32>
    %c0_11 = arith.constant 0 : index
    %c0_12 = arith.constant 0 : index
    %9 = vector.load %arg6[%c0_11, %c0_12] : memref<8x128xf32, #tpu.memory_space<vmem>>, vector<8x128xf32>
    tpu.vector_store %arg6[%c0_11, %c0_12], %8 {strides = array<i32>} : memref<8x128xf32, #tpu.memory_space<vmem>>, vector<8x128xf32>,
    return
  }
  func.func @transform_0(%arg0: i32) -> (i32, i32) {
    %c0_i32 = arith.constant 0 : i32
    %c0_i32_0 = arith.constant 0 : i32
    return %arg0, %c0_i32 : i32, i32
  }
  func.func @transform_1(%arg0: i32) -> (i32, i32) {
    %c0_i32 = arith.constant 0 : i32
    %c0_i32_0 = arith.constant 0 : i32
    return %arg0, %c0_i32 : i32, i32
  }
  func.func @transform_2(%arg0: i32) -> (i32, i32) {
    %c0_i32 = arith.constant 0 : i32
    %c0_i32_0 = arith.constant 0 : i32
    %c0_i32_1 = arith.constant 0 : i32
    return %c0_i32, %c0_i32_0 : i32, i32
  }
  func.func @transform_3(%arg0: i32) -> (i32, i32) {
    %c0_i32 = arith.constant 0 : i32
    %c0_i32_0 = arith.constant 0 : i32
    %c0_i32_1 = arith.constant 0 : i32
    return %c0_i32, %c0_i32_0 : i32, i32
  }
  func.func @transform_4(%arg0: i32) -> (i32, i32) {
    %c0_i32 = arith.constant 0 : i32
    %c0_i32_0 = arith.constant 0 : i32
    %c0_i32_1 = arith.constant 0 : i32
    return %c0_i32, %c0_i32_0 : i32, i32
  }
  func.func @transform_5(%arg0: i32) -> (i32, i32) {
    %c0_i32 = arith.constant 0 : i32
    %c0_i32_0 = arith.constant 0 : i32
    return %arg0, %c0_i32 : i32, i32
  }
}

</mosaic_0001>

<llo_original>
// kernel: tpu_custom_call.1
$region0: #{tpu_custom_call.1}
  #allocation0 [shape = 'u32[]', space=smem, size = 0x4, offset = 0x4, fixed_abs, tag = 'smem constant byte address 0x4 - core index']
  #allocation1 [shape = 'u32[144,128]{1,0:T(1,128)}', space=vmem, size = 0x12000, scoped, tag = 'internal scratch']
  %s0 = inlined_call_operand.hbm [shape: f32[16,128], index: 0, kind: input, shape index: {}]
  %s1 = inlined_call_operand.hbm [shape: f32[16,16], index: 1, kind: input, shape index: {}]
  %s2 = inlined_call_operand.hbm [shape: f32[128,512], index: 2, kind: input, shape index: {}]
  %s3 = inlined_call_operand.hbm [shape: f32[16,512], index: 3, kind: input, shape index: {}]
  %s4 = inlined_call_operand.hbm [shape: f32[512,128], index: 4, kind: input, shape index: {}]
  %s5 = inlined_call_operand.hbm [shape: f32[16,128], index: 5, kind: output, shape index: {}]
  %s6 = sld [smem:[#allocation0]]
  $region73: #{tpu_custom_call.1} parent=0
    _
  %s8 = ssub.s32 1, %s6
  %s9 = scalar_select 0, %s8, %s6
  $region1: #{tpu_custom_call.1} parent=0
    #allocation2 [shape = 'u8[8192]{0}', space=vmem, size = 0x2000, scoped, tag = 'input window, operand 0']
    #allocation3 [shape = 's32[2]{0}', space=sflag, size = 0x8, scoped, tag = 'scoped memory for tpu_custom_call.1']
    #allocation4 [shape = 's32[2]{0}', space=sflag, size = 0x8, scoped, tag = 'scoped memory for tpu_custom_call.1']
    #allocation5 [shape = 'u8[8192]{0}', space=vmem, size = 0x2000, scoped, tag = 'input window, operand 1']
    #allocation6 [shape = 's32[2]{0}', space=sflag, size = 0x8, scoped, tag = 'scoped memory for tpu_custom_call.1']
    #allocation7 [shape = 'u8[262144]{0}', space=vmem, size = 0x40000, scoped, tag = 'input window, operand 2, single buffered']
    #allocation8 [shape = 'u8[32768]{0}', space=vmem, size = 0x8000, scoped, tag = 'input window, operand 3, single buffered']
    #allocation9 [shape = 's32[1]{0}', space=sflag, size = 0x4, scoped, tag = 'scoped memory for tpu_custom_call.1']
    #allocation10 [shape = 'u8[262144]{0}', space=vmem, size = 0x40000, scoped, tag = 'input window, operand 4, single buffered']
    #allocation11 [shape = 'u8[8192]{0}', space=vmem, size = 0x2000, scoped, tag = 'output window, operand 0']
    %10 = vsyncpa [#allocation3], 0
    %s11 = scalar_lea.sflag [#allocation3], 1
    %12 = vsyncpa %s11, 0
    %13 = vsyncpa [#allocation6], 0
    %s14 = scalar_lea.sflag [#allocation6], 1
    %15 = vsyncpa %s14, 0
    %16 = vsyncpa [#allocation9], 0
    %17 = vsyncpa [#allocation4], 0
    %s18 = scalar_lea.sflag [#allocation4], 1
    %19 = vsyncpa %s18, 0
    loop: start=0, step=1, limit=4
    $region2: #{tpu_custom_call.1} parent=1 // loop_pre_header
      _
    $region3: #{tpu_custom_call.1} parent=1 // loop_header
      %s21 = sphi 0, %s25
      %p22 = scmp.ge.s32.totalorder %s21, 4
      %s31 = sphi 0, %s33
      %s34 = sphi 0, %s31
      %s35 = sphi 0, %s34
      %s51 = sphi 0, %s35
      %s57 = sphi 0, %s59
      %s60 = sphi 0, %s57
      %s61 = sphi 0, %s60
      %s77 = sphi 0, %s61
      %s81 = sphi 0, %s81
      %s83 = sphi 0, %s81
      %s84 = sphi 0, %s83
      %s98 = sphi 0, %s84
      %s102 = sphi 0, %s102
      %s104 = sphi 0, %s102
      %s105 = sphi 0, %s104
      %s119 = sphi 0, %s105
      %s123 = sphi 0, %s123
      %s125 = sphi 0, %s123
      %s126 = sphi 0, %s125
      %s140 = sphi 0, %s126
      %s146 = sphi 0, %s148
      %s149 = sphi 0, %s146
      %s150 = sphi 0, %s149
      %s166 = sphi 0, %s150
    $region4: #{tpu_custom_call.1} parent=1 // loop_header_branch
      %24 = sbr.rel (%p22) target = $region8
    $region5: #{tpu_custom_call.1} parent=1 // loop_body
      %s26 = ssub.s32 %s21, 1
      %s27 = ssub.s32 %s21, 2
      %s28 = sadd.s32 %s21, 1
      %s29 = ssub.s32 %s21, %s28
      %p30 = scmp.eq.s32.totalorder %s29, 0
      %s32 = sadd.s32 %s31, 1
      %s33 = scalar_select %p30, %s31, %s32
      %p36 = pneg %p30
      %p37 = scmp.eq.s32.totalorder %s21, 1
      %p38 = por %p36, %p37
      %p39 = scmp.ne.s32.totalorder %s31, %s34
      %p40 = scmp.eq.s32.totalorder %s21, 0
      %p41 = por %p39, %p40
      %p42 = scmp.ne.s32.totalorder %s31, %s34
      %p43 = scmp.eq.s32.totalorder %s26, 1
      %p44 = por %p42, %p43
      %p45 = scmp.ne.s32.totalorder %s34, %s35
      %p46 = scmp.eq.s32.totalorder %s26, 0
      %p47 = por %p45, %p46
      %p48 = scmp.ne.s32.totalorder %s34, %s35
      %p49 = scmp.eq.s32.totalorder %s27, 1
      %p50 = por %p48, %p49
      %p52 = scmp.ne.s32.totalorder %s35, %s51
      %p53 = scmp.eq.s32.totalorder %s27, 0
      %p54 = por %p52, %p53
      %s55 = ssub.s32 %s21, %s28
      %p56 = scmp.eq.s32.totalorder %s55, 0
      %s58 = sadd.s32 %s57, 1
      %s59 = scalar_select %p56, %s57, %s58
      %p62 = pneg %p56
      %p63 = scmp.eq.s32.totalorder %s21, 1
      %p64 = por %p62, %p63
      %p65 = scmp.ne.s32.totalorder %s57, %s60
      %p66 = scmp.eq.s32.totalorder %s21, 0
      %p67 = por %p65, %p66
      %p68 = scmp.ne.s32.totalorder %s57, %s60
      %p69 = scmp.eq.s32.totalorder %s26, 1
      %p70 = por %p68, %p69
      %p71 = scmp.ne.s32.totalorder %s60, %s61
      %p72 = scmp.eq.s32.totalorder %s26, 0
      %p73 = por %p71, %p72
      %p74 = scmp.ne.s32.totalorder %s60, %s61
      %p75 = scmp.eq.s32.totalorder %s27, 1
      %p76 = por %p74, %p75
      %p78 = scmp.ne.s32.totalorder %s61, %s77
      %p79 = scmp.eq.s32.totalorder %s27, 0
      %p80 = por %p78, %p79
      %s82 = sadd.s32 %s81, 1
      %p85 = scmp.eq.s32.totalorder %s21, 1
      %p86 = scmp.ne.s32.totalorder %s81, %s83
      %p87 = scmp.eq.s32.totalorder %s21, 0
      %p88 = por %p86, %p87
      %p89 = scmp.ne.s32.totalorder %s81, %s83
      %p90 = scmp.eq.s32.totalorder %s26, 1
      %p91 = por %p89, %p90
      %p92 = scmp.ne.s32.totalorder %s83, %s84
      %p93 = scmp.eq.s32.totalorder %s26, 0
      %p94 = por %p92, %p93
      %p95 = scmp.ne.s32.totalorder %s83, %s84
      %p96 = scmp.eq.s32.totalorder %s27, 1
      %p97 = por %p95, %p96
      %p99 = scmp.ne.s32.totalorder %s84, %s98
      %p100 = scmp.eq.s32.totalorder %s27, 0
      %p101 = por %p99, %p100
      %s103 = sadd.s32 %s102, 1
      %p106 = scmp.eq.s32.totalorder %s21, 1
      %p107 = scmp.ne.s32.totalorder %s102, %s104
      %p108 = scmp.eq.s32.totalorder %s21, 0
      %p109 = por %p107, %p108
      %p110 = scmp.ne.s32.totalorder %s102, %s104
      %p111 = scmp.eq.s32.totalorder %s26, 1
      %p112 = por %p110, %p111
      %p113 = scmp.ne.s32.totalorder %s104, %s105
      %p114 = scmp.eq.s32.totalorder %s26, 0
      %p115 = por %p113, %p114
      %p116 = scmp.ne.s32.totalorder %s104, %s105
      %p117 = scmp.eq.s32.totalorder %s27, 1
      %p118 = por %p116, %p117
      %p120 = scmp.ne.s32.totalorder %s105, %s119
      %p121 = scmp.eq.s32.totalorder %s27, 0
      %p122 = por %p120, %p121
      %s124 = sadd.s32 %s123, 1
      %p127 = scmp.eq.s32.totalorder %s21, 1
      %p128 = scmp.ne.s32.totalorder %s123, %s125
      %p129 = scmp.eq.s32.totalorder %s21, 0
      %p130 = por %p128, %p129
      %p131 = scmp.ne.s32.totalorder %s123, %s125
      %p132 = scmp.eq.s32.totalorder %s26, 1
      %p133 = por %p131, %p132
      %p134 = scmp.ne.s32.totalorder %s125, %s126
      %p135 = scmp.eq.s32.totalorder %s26, 0
      %p136 = por %p134, %p135
      %p137 = scmp.ne.s32.totalorder %s125, %s126
      %p138 = scmp.eq.s32.totalorder %s27, 1
      %p139 = por %p137, %p138
      %p141 = scmp.ne.s32.totalorder %s126, %s140
      %p142 = scmp.eq.s32.totalorder %s27, 0
      %p143 = por %p141, %p142
      %s144 = ssub.s32 %s21, %s28
      %p145 = scmp.eq.s32.totalorder %s144, 0
      %s147 = sadd.s32 %s146, 1
      %s148 = scalar_select %p145, %s146, %s147
      %p151 = pneg %p145
      %p152 = scmp.eq.s32.totalorder %s21, 1
      %p153 = por %p151, %p152
      %p154 = scmp.ne.s32.totalorder %s146, %s149
      %p155 = scmp.eq.s32.totalorder %s21, 0
      %p156 = por %p154, %p155
      %p157 = scmp.ne.s32.totalorder %s146, %s149
      %p158 = scmp.eq.s32.totalorder %s26, 1
      %p159 = por %p157, %p158
      %p160 = scmp.ne.s32.totalorder %s149, %s150
      %p161 = scmp.eq.s32.totalorder %s26, 0
      %p162 = por %p160, %p161
      %p163 = scmp.ne.s32.totalorder %s149, %s150
      %p164 = scmp.eq.s32.totalorder %s27, 1
      %p165 = por %p163, %p164
      %p167 = scmp.ne.s32.totalorder %s150, %s166
      %p168 = scmp.eq.s32.totalorder %s27, 0
      %p169 = por %p167, %p168
      %p170 = scmp.le.s32.totalorder 1, %s21
      %p171 = scmp.lt.s32.totalorder %s21, 3
      %p172 = pnand %p170, %p171
      %p173 = pneg %p172
      // Predicated region
      $region9: #{tpu_custom_call.1} parent=5 // pred_check
        _
      $region10: #{tpu_custom_call.1} parent=5 // pred_check_branch
        %175 = sbr.rel (%p172) target = $region12
      $region11: #{tpu_custom_call.1} parent=5 // pred_region
        %s176 = ssub.s32 %s21, 1
        // Predicated region
        $region13: #{tpu_custom_call.1} parent=11 // pred_check
          %p177 = pneg %p94
        $region14: #{tpu_custom_call.1} parent=11 // pred_check_branch
          %179 = sbr.rel (%p177) target = $region16
        $region15: #{tpu_custom_call.1} parent=11 // pred_region
          %s181 = ssub.s32 8192, 8192
          %182 = vsyncadd [#allocation6], %s181
          %s183 = sshll.u32 [#allocation7], 4
          %s184 = int_to_ptr.vmem [resolvable:$true] %s183
          %189 = dma.hbm_to_vmem [thread:$0]  %s2, 8192, %s184, [#allocation6], 512, 512, 32
        $region16: #{tpu_custom_call.1} parent=11 // pred_fallthru
          _
        // Predicated region
        $region17: #{tpu_custom_call.1} parent=11 // pred_check
          %p190 = pneg %p115
        $region18: #{tpu_custom_call.1} parent=11 // pred_check_branch
          %192 = sbr.rel (%p190) target = $region20
        $region19: #{tpu_custom_call.1} parent=11 // pred_region
          %s194 = ssub.s32 1024, 1024
          %195 = vsyncadd [#allocation9], %s194
          %s196 = sshll.u32 [#allocation8], 4
          %s197 = int_to_ptr.vmem [resolvable:$true] %s196
          %202 = dma.hbm_to_vmem [thread:$0]  %s3, 1024, %s197, [#allocation9], 512, 512, 32
        $region20: #{tpu_custom_call.1} parent=11 // pred_fallthru
          _
        // Predicated region
        $region21: #{tpu_custom_call.1} parent=11 // pred_check
          %p203 = pneg %p136
        $region22: #{tpu_custom_call.1} parent=11 // pred_check_branch
          %205 = sbr.rel (%p203) target = $region24
        $region23: #{tpu_custom_call.1} parent=11 // pred_region
          %s207 = ssub.s32 8192, 8192
          %208 = vsyncadd [#allocation9], %s207
          %s209 = sshll.u32 [#allocation10], 4
          %s210 = int_to_ptr.vmem [resolvable:$true] %s209
          %215 = dma.hbm_to_vmem [thread:$0]  %s4, 8192, %s210, [#allocation9], 128, 128, 8
        $region24: #{tpu_custom_call.1} parent=11 // pred_fallthru
          _
      $region12: #{tpu_custom_call.1} parent=5 // pred_fallthru
        _
      %p216 = scmp.lt.s32.totalorder %s21, 2
      // Predicated region
      $region25: #{tpu_custom_call.1} parent=5 // pred_check
        %p217 = pneg %p216
      $region26: #{tpu_custom_call.1} parent=5 // pred_check_branch
        %219 = sbr.rel (%p217) target = $region28
      $region27: #{tpu_custom_call.1} parent=5 // pred_region
        // Predicated region
        $region29: #{tpu_custom_call.1} parent=27 // pred_check
          %p220 = pneg %p41
        $region30: #{tpu_custom_call.1} parent=27 // pred_check_branch
          %222 = sbr.rel (%p220) target = $region32
        $region31: #{tpu_custom_call.1} parent=27 // pred_region
          %s223 = sand.u32 %s31, 1
          %s224 = scalar_lea.sflag [#allocation3], %s223
          %s225 = sand.u32 %s31, 1
          %s226 = smul.addr %s225, 8
          %s227 = scalar_lea.vmem [#allocation2], %s226
          %s229 = ssub.s32 128, 128
          %230 = vsyncadd %s224, %s229
          %s231 = smul.addr %s21, 128
          %s232 = scalar_lea.hbm %s0, %s231
          %s234 = sshll.u32 %s227, 4
          %s235 = int_to_ptr.vmem [resolvable:$true] %s234
          %237 = dma.hbm_to_vmem [thread:$0]  %s232, 128, %s235, %s224
        $region32: #{tpu_custom_call.1} parent=27 // pred_fallthru
          _
        // Predicated region
        $region33: #{tpu_custom_call.1} parent=27 // pred_check
          %p238 = pneg %p67
        $region34: #{tpu_custom_call.1} parent=27 // pred_check_branch
          %240 = sbr.rel (%p238) target = $region36
        $region35: #{tpu_custom_call.1} parent=27 // pred_region
          %s241 = sand.u32 %s21, 1
          %s242 = scalar_lea.sflag [#allocation6], %s241
          %s243 = sand.u32 %s57, 1
          %s244 = smul.addr %s243, 8
          %s245 = scalar_lea.vmem [#allocation5], %s244
          %s247 = ssub.s32 128, 128
          %248 = vsyncadd %s242, %s247
          %s249 = smul.addr %s21, 128
          %s250 = scalar_lea.hbm %s1, %s249
          %s252 = sshll.u32 %s245, 4
          %s253 = int_to_ptr.vmem [resolvable:$true] %s252
          %255 = dma.hbm_to_vmem [thread:$0]  %s250, 128, %s253, %s242
        $region36: #{tpu_custom_call.1} parent=27 // pred_fallthru
          _
      $region28: #{tpu_custom_call.1} parent=5 // pred_fallthru
        _
      %p256 = scmp.le.s32.totalorder 1, %s21
      %p257 = scmp.lt.s32.totalorder %s21, 3
      %p258 = pnand %p256, %p257
      %p259 = pneg %p258
      // Predicated region
      $region37: #{tpu_custom_call.1} parent=5 // pred_check
        _
      $region38: #{tpu_custom_call.1} parent=5 // pred_check_branch
        %261 = sbr.rel (%p258) target = $region40
      $region39: #{tpu_custom_call.1} parent=5 // pred_region
        %s262 = ssub.s32 %s21, 1
        %s263 = sand.u32 %s34, 1
        %s264 = scalar_lea.sflag [#allocation3], %s263
        %s265 = sand.u32 %s34, 1
        %s266 = smul.addr %s265, 8
        %s267 = scalar_lea.vmem [#allocation2], %s266
        // Predicated region
        $region41: #{tpu_custom_call.1} parent=39 // pred_check
          %p268 = pneg %p47
        $region42: #{tpu_custom_call.1} parent=39 // pred_check_branch
          %270 = sbr.rel (%p268) target = $region44
        $region43: #{tpu_custom_call.1} parent=39 // pred_region
          %271 = dma.done %s264, 128
        $region44: #{tpu_custom_call.1} parent=39 // pred_fallthru
          _
        %s272 = sand.u32 %s26, 1
        %s273 = scalar_lea.sflag [#allocation6], %s272
        %s274 = sand.u32 %s60, 1
        %s275 = smul.addr %s274, 8
        %s276 = scalar_lea.vmem [#allocation5], %s275
        // Predicated region
        $region45: #{tpu_custom_call.1} parent=39 // pred_check
          %p277 = pneg %p73
        $region46: #{tpu_custom_call.1} parent=39 // pred_check_branch
          %279 = sbr.rel (%p277) target = $region48
        $region47: #{tpu_custom_call.1} parent=39 // pred_region
          %280 = dma.done %s273, 128
        $region48: #{tpu_custom_call.1} parent=39 // pred_fallthru
          _
        // Predicated region
        $region49: #{tpu_custom_call.1} parent=39 // pred_check
          %p281 = pneg %p94
        $region50: #{tpu_custom_call.1} parent=39 // pred_check_branch
          %283 = sbr.rel (%p281) target = $region52
        $region51: #{tpu_custom_call.1} parent=39 // pred_region
          %284 = dma.done [#allocation6], 8192
        $region52: #{tpu_custom_call.1} parent=39 // pred_fallthru
          _
        // Predicated region
        $region53: #{tpu_custom_call.1} parent=39 // pred_check
          %p285 = pneg %p115
        $region54: #{tpu_custom_call.1} parent=39 // pred_check_branch
          %287 = sbr.rel (%p285) target = $region56
        $region55: #{tpu_custom_call.1} parent=39 // pred_region
          %288 = dma.done [#allocation9], 1024
        $region56: #{tpu_custom_call.1} parent=39 // pred_fallthru
          _
        // Predicated region
        $region57: #{tpu_custom_call.1} parent=39 // pred_check
          %p289 = pneg %p136
        $region58: #{tpu_custom_call.1} parent=39 // pred_check_branch
          %291 = sbr.rel (%p289) target = $region60
        $region59: #{tpu_custom_call.1} parent=39 // pred_region
          %292 = dma.done [#allocation9], 8192
        $region60: #{tpu_custom_call.1} parent=39 // pred_fallthru
          _
        %s293 = sand.u32 %s34, 1
        %s294 = scalar_lea.sflag [#allocation3], %s293
        %s295 = sand.u32 %s34, 1
        %s296 = smul.addr %s295, 8
        %s297 = scalar_lea.vmem [#allocation2], %s296
        %p298 = pneg %p47
        %p299 = pneg %p44
        %s300 = sand.u32 %s26, 1
        %s301 = scalar_lea.sflag [#allocation6], %s300
        %s302 = sand.u32 %s60, 1
        %s303 = smul.addr %s302, 8
        %s304 = scalar_lea.vmem [#allocation5], %s303
        %p305 = pneg %p73
        %p306 = pneg %p70
        %p307 = pneg %p94
        %p308 = pneg %p91
        %p309 = pneg %p115
        %p310 = pneg %p112
        %p311 = pneg %p136
        %p312 = pneg %p133
        %p313 = pneg %p162
        %p314 = pneg %p159
        %s315 = sand.u32 %s149, 1
        %s316 = scalar_lea.sflag [#allocation4], %s315
        %s317 = sand.u32 %s149, 1
        %s318 = smul.addr %s317, 8
        %s319 = scalar_lea.vmem [#allocation11], %s318
        %v320 = vld [vmem:[%s267] sm:$0xff]
        %v321 = vld [vmem:[#allocation7] sm:$0xff]
        %v322 = vld [vmem:[#allocation7 + $0x8] sm:$0xff]
        %v323 = vld [vmem:[#allocation7 + $0x10] sm:$0xff]
        %v324 = vld [vmem:[#allocation7 + $0x18] sm:$0xff]
        %v325 = vld [vmem:[#allocation7 + $0x20] sm:$0xff]
        %v326 = vld [vmem:[#allocation7 + $0x28] sm:$0xff]
        %v327 = vld [vmem:[#allocation7 + $0x30] sm:$0xff]
        %v328 = vld [vmem:[#allocation7 + $0x38] sm:$0xff]
        %v329 = vld [vmem:[#allocation7 + $0x40] sm:$0xff]
        %v330 = vld [vmem:[#allocation7 + $0x48] sm:$0xff]
        %v331 = vld [vmem:[#allocation7 + $0x50] sm:$0xff]
        %v332 = vld [vmem:[#allocation7 + $0x58] sm:$0xff]
        %v333 = vld [vmem:[#allocation7 + $0x60] sm:$0xff]
        %v334 = vld [vmem:[#allocation7 + $0x68] sm:$0xff]
        %v335 = vld [vmem:[#allocation7 + $0x70] sm:$0xff]
        %v336 = vld [vmem:[#allocation7 + $0x78] sm:$0xff]
        %v337 = vld [vmem:[#allocation7 + $0x80] sm:$0xff]
        %v338 = vld [vmem:[#allocation7 + $0x88] sm:$0xff]
        %v339 = vld [vmem:[#allocation7 + $0x90] sm:$0xff]
        %v340 = vld [vmem:[#allocation7 + $0x98] sm:$0xff]
        %v341 = vld [vmem:[#allocation7 + $0xa0] sm:$0xff]
        %v342 = vld [vmem:[#allocation7 + $0xa8] sm:$0xff]
        %v343 = vld [vmem:[#allocation7 + $0xb0] sm:$0xff]
        %v344 = vld [vmem:[#allocation7 + $0xb8] sm:$0xff]
        %v345 = vld [vmem:[#allocation7 + $0xc0] sm:$0xff]
        %v346 = vld [vmem:[#allocation7 + $0xc8] sm:$0xff]
        %v347 = vld [vmem:[#allocation7 + $0xd0] sm:$0xff]
        %v348 = vld [vmem:[#allocation7 + $0xd8] sm:$0xff]
        %v349 = vld [vmem:[#allocation7 + $0xe0] sm:$0xff]
        %v350 = vld [vmem:[#allocation7 + $0xe8] sm:$0xff]
        %v351 = vld [vmem:[#allocation7 + $0xf0] sm:$0xff]
        %v352 = vld [vmem:[#allocation7 + $0xf8] sm:$0xff]
        %v353 = vld [vmem:[#allocation7 + $0x100] sm:$0xff]
        %v354 = vld [vmem:[#allocation7 + $0x108] sm:$0xff]
        %v355 = vld [vmem:[#allocation7 + $0x110] sm:$0xff]
        %v356 = vld [vmem:[#allocation7 + $0x118] sm:$0xff]
        %v357 = vld [vmem:[#allocation7 + $0x120] sm:$0xff]
        %v358 = vld [vmem:[#allocation7 + $0x128] sm:$0xff]
        %v359 = vld [vmem:[#allocation7 + $0x130] sm:$0xff]
        %v360 = vld [vmem:[#allocation7 + $0x138] sm:$0xff]
        %v361 = vld [vmem:[#allocation7 + $0x140] sm:$0xff]
        %v362 = vld [vmem:[#allocation7 + $0x148] sm:$0xff]
        %v363 = vld [vmem:[#allocation7 + $0x150] sm:$0xff]
        %v364 = vld [vmem:[#allocation7 + $0x158] sm:$0xff]
        %v365 = vld [vmem:[#allocation7 + $0x160] sm:$0xff]
        %v366 = vld [vmem:[#allocation7 + $0x168] sm:$0xff]
        %v367 = vld [vmem:[#allocation7 + $0x170] sm:$0xff]
        %v368 = vld [vmem:[#allocation7 + $0x178] sm:$0xff]
        %v369 = vld [vmem:[#allocation7 + $0x180] sm:$0xff]
        %v370 = vld [vmem:[#allocation7 + $0x188] sm:$0xff]
        %v371 = vld [vmem:[#allocation7 + $0x190] sm:$0xff]
        %v372 = vld [vmem:[#allocation7 + $0x198] sm:$0xff]
        %v373 = vld [vmem:[#allocation7 + $0x1a0] sm:$0xff]
        %v374 = vld [vmem:[#allocation7 + $0x1a8] sm:$0xff]
        %v375 = vld [vmem:[#allocation7 + $0x1b0] sm:$0xff]
        %v376 = vld [vmem:[#allocation7 + $0x1b8] sm:$0xff]
        %v377 = vld [vmem:[#allocation7 + $0x1c0] sm:$0xff]
        %v378 = vld [vmem:[#allocation7 + $0x1c8] sm:$0xff]
        %v379 = vld [vmem:[#allocation7 + $0x1d0] sm:$0xff]
        %v380 = vld [vmem:[#allocation7 + $0x1d8] sm:$0xff]
        %v381 = vld [vmem:[#allocation7 + $0x1e0] sm:$0xff]
        %v382 = vld [vmem:[#allocation7 + $0x1e8] sm:$0xff]
        %v383 = vld [vmem:[#allocation7 + $0x1f0] sm:$0xff]
        %v384 = vld [vmem:[#allocation7 + $0x1f8] sm:$0xff]
        %385 = vmatprep.subr.mxu0 %v322
        %386 = vmatpush1.msra.mxu0 %v321
        %387 = vmatprep.subr.mxu0 %v326
        %388 = vmatpush1.msra.mxu0 %v325
        %389 = vmatprep.subr.mxu0 %v330
        %390 = vmatpush1.msra.mxu0 %v329
        %391 = vmatprep.subr.mxu0 %v334
        %392 = vmatpush1.msra.mxu0 %v333
        %393 = vmatprep.subr.mxu0 %v338
        %394 = vmatpush1.msra.mxu0 %v337
        %395 = vmatprep.subr.mxu0 %v342
        %396 = vmatpush1.msra.mxu0 %v341
        %397 = vmatprep.subr.mxu0 %v346
        %398 = vmatpush1.msra.mxu0 %v345
        %399 = vmatprep.subr.mxu0 %v350
        %400 = vmatpush1.msra.mxu0 %v349
        %401 = vmatprep.subr.mxu0 %v354
        %402 = vmatpush1.msra.mxu0 %v353
        %403 = vmatprep.subr.mxu0 %v358
        %404 = vmatpush1.msra.mxu0 %v357
        %405 = vmatprep.subr.mxu0 %v362
        %406 = vmatpush1.msra.mxu0 %v361
        %407 = vmatprep.subr.mxu0 %v366
        %408 = vmatpush1.msra.mxu0 %v365
        %409 = vmatprep.subr.mxu0 %v370
        %410 = vmatpush1.msra.mxu0 %v369
        %411 = vmatprep.subr.mxu0 %v374
        %412 = vmatpush1.msra.mxu0 %v373
        %413 = vmatprep.subr.mxu0 %v378
        %414 = vmatpush1.msra.mxu0 %v377
        %415 = vmatprep.subr.mxu0 %v382
        %416 = vmatpush1.msra.mxu0 %v381
        %417 = vmatprep.subr.mxu0 0.0
        %418 = vmatpush1.msra.mxu0 0.0
        %419 = vmatprep.subr.mxu0 0.0
        %420 = vmatpush1.msra.mxu0 0.0
        %421 = vmatprep.subr.mxu0 0.0
        %422 = vmatpush1.msra.mxu0 0.0
        %423 = vmatprep.subr.mxu0 0.0
        %424 = vmatpush1.msra.mxu0 0.0
        %425 = vmatprep.subr.mxu0 0.0
        %426 = vmatpush1.msra.mxu0 0.0
        %427 = vmatprep.subr.mxu0 0.0
        %428 = vmatpush1.msra.mxu0 0.0
        %429 = vmatprep.subr.mxu0 0.0
        %430 = vmatpush1.msra.mxu0 0.0
        %431 = vmatprep.subr.mxu0 0.0
        %432 = vmatpush1.msra.mxu0 0.0
        %433 = vmatprep.subr.mxu0 0.0
        %434 = vmatpush1.msra.mxu0 0.0
        %435 = vmatprep.subr.mxu0 0.0
        %436 = vmatpush1.msra.mxu0 0.0
        %437 = vmatprep.subr.mxu0 0.0
        %438 = vmatpush1.msra.mxu0 0.0
        %439 = vmatprep.subr.mxu0 0.0
        %440 = vmatpush1.msra.mxu0 0.0
        %441 = vmatprep.subr.mxu0 0.0
        %442 = vmatpush1.msra.mxu0 0.0
        %443 = vmatprep.subr.mxu0 0.0
        %444 = vmatpush1.msra.mxu0 0.0
        %445 = vmatprep.subr.mxu0 0.0
        %446 = vmatpush1.msra.mxu0 0.0
        %447 = vmatprep.subr.mxu0 0.0
        %448 = vmatpush1.msra.mxu0 0.0
        %449 = vmatprep.mubr.f32.mxu0 0.0
        %450 = vmatmul.mubr.f32.gmra.mrb[0].mxu0 %v320
        %v451 = vpop.f32.mrb[0].mxu0
        %v452 = vadd.f32 0.0, %v451
        %v453 = vpop.f32.mrb[0].mxu0
        %v454 = vadd.f32 0.0, %v453
        %455 = vdwg.mxu0
        %456 = vmatprep.subr.mxu0 %v324
        %457 = vmatpush1.msra.mxu0 %v323
        %458 = vmatprep.subr.mxu0 %v328
        %459 = vmatpush1.msra.mxu0 %v327
        %460 = vmatprep.subr.mxu0 %v332
        %461 = vmatpush1.msra.mxu0 %v331
        %462 = vmatprep.subr.mxu0 %v336
        %463 = vmatpush1.msra.mxu0 %v335
        %464 = vmatprep.subr.mxu0 %v340
        %465 = vmatpush1.msra.mxu0 %v339
        %466 = vmatprep.subr.mxu0 %v344
        %467 = vmatpush1.msra.mxu0 %v343
        %468 = vmatprep.subr.mxu0 %v348
        %469 = vmatpush1.msra.mxu0 %v347
        %470 = vmatprep.subr.mxu0 %v352
        %471 = vmatpush1.msra.mxu0 %v351
        %472 = vmatprep.subr.mxu0 %v356
        %473 = vmatpush1.msra.mxu0 %v355
        %474 = vmatprep.subr.mxu0 %v360
        %475 = vmatpush1.msra.mxu0 %v359
        %476 = vmatprep.subr.mxu0 %v364
        %477 = vmatpush1.msra.mxu0 %v363
        %478 = vmatprep.subr.mxu0 %v368
        %479 = vmatpush1.msra.mxu0 %v367
        %480 = vmatprep.subr.mxu0 %v372
        %481 = vmatpush1.msra.mxu0 %v371
        %482 = vmatprep.subr.mxu0 %v376
        %483 = vmatpush1.msra.mxu0 %v375
        %484 = vmatprep.subr.mxu0 %v380
        %485 = vmatpush1.msra.mxu0 %v379
        %486 = vmatprep.subr.mxu0 %v384
        %487 = vmatpush1.msra.mxu0 %v383
        %488 = vmatprep.subr.mxu0 0.0
        %489 = vmatpush1.msra.mxu0 0.0
        %490 = vmatprep.subr.mxu0 0.0
        %491 = vmatpush1.msra.mxu0 0.0
        %492 = vmatprep.subr.mxu0 0.0
        %493 = vmatpush1.msra.mxu0 0.0
        %494 = vmatprep.subr.mxu0 0.0
        %495 = vmatpush1.msra.mxu0 0.0
        %496 = vmatprep.subr.mxu0 0.0
        %497 = vmatpush1.msra.mxu0 0.0
        %498 = vmatprep.subr.mxu0 0.0
        %499 = vmatpush1.msra.mxu0 0.0
        %500 = vmatprep.subr.mxu0 0.0
        %501 = vmatpush1.msra.mxu0 0.0
        %502 = vmatprep.subr.mxu0 0.0
        %503 = vmatpush1.msra.mxu0 0.0
        %504 = vmatprep.subr.mxu0 0.0
        %505 = vmatpush1.msra.mxu0 0.0
        %506 = vmatprep.subr.mxu0 0.0
        %507 = vmatpush1.msra.mxu0 0.0
        %508 = vmatprep.subr.mxu0 0.0
        %509 = vmatpush1.msra.mxu0 0.0
        %510 = vmatprep.subr.mxu0 0.0
        %511 = vmatpush1.msra.mxu0 0.0
        %512 = vmatprep.subr.mxu0 0.0
        %513 = vmatpush1.msra.mxu0 0.0
        %514 = vmatprep.subr.mxu0 0.0
        %515 = vmatpush1.msra.mxu0 0.0
        %516 = vmatprep.subr.mxu0 0.0
        %517 = vmatpush1.msra.mxu0 0.0
        %518 = vmatprep.subr.mxu0 0.0
        %519 = vmatpush1.msra.mxu0 0.0
        %520 = vmatprep.mubr.f32.mxu0 0.0
        %521 = vmatmul.mubr.f32.gmra.mrb[0].mxu0 %v320
        %v522 = vpop.f32.mrb[0].mxu0
        %v523 = vadd.f32 0.0, %v522
        %v524 = vpop.f32.mrb[0].mxu0
        %v525 = vadd.f32 0.0, %v524
        %526 = vdwg.mxu0
        %v527 = vld [vmem:[%s276] sm:$0xff]
        %v528 = vld [vmem:[#allocation8] sm:$0xff]
        %v529 = vld [vmem:[#allocation8 + $0x8] sm:$0xff]
        %v530 = vld [vmem:[#allocation8 + $0x10] sm:$0xff]
        %v531 = vld [vmem:[#allocation8 + $0x18] sm:$0xff]
        %v532 = vld [vmem:[#allocation8 + $0x20] sm:$0xff]
        %v533 = vld [vmem:[#allocation8 + $0x28] sm:$0xff]
        %v534 = vld [vmem:[#allocation8 + $0x30] sm:$0xff]
        %v535 = vld [vmem:[#allocation8 + $0x38] sm:$0xff]
        %vm536 = vcmask 130048
        %v538 = vsel %vm536, %v527, 0
        %540 = vmatprep.subr.mxu0 %v529
        %541 = vmatpush1.msra.mxu0 %v528
        %542 = vmatprep.subr.mxu0 %v533
        %543 = vmatpush1.msra.mxu0 %v532
        %544 = vmatprep.subr.mxu0 0.0
        %545 = vmatpush1.msra.mxu0 0.0
        %546 = vmatprep.subr.mxu0 0.0
        %547 = vmatpush1.msra.mxu0 0.0
        %548 = vmatprep.subr.mxu0 0.0
        %549 = vmatpush1.msra.mxu0 0.0
        %550 = vmatprep.subr.mxu0 0.0
        %551 = vmatpush1.msra.mxu0 0.0
        %552 = vmatprep.subr.mxu0 0.0
        %553 = vmatpush1.msra.mxu0 0.0
        %554 = vmatprep.subr.mxu0 0.0
        %555 = vmatpush1.msra.mxu0 0.0
        %556 = vmatprep.subr.mxu0 0.0
        %557 = vmatpush1.msra.mxu0 0.0
        %558 = vmatprep.subr.mxu0 0.0
        %559 = vmatpush1.msra.mxu0 0.0
        %560 = vmatprep.subr.mxu0 0.0
        %561 = vmatpush1.msra.mxu0 0.0
        %562 = vmatprep.subr.mxu0 0.0
        %563 = vmatpush1.msra.mxu0 0.0
        %564 = vmatprep.subr.mxu0 0.0
        %565 = vmatpush1.msra.mxu0 0.0
        %566 = vmatprep.subr.mxu0 0.0
        %567 = vmatpush1.msra.mxu0 0.0
        %568 = vmatprep.subr.mxu0 0.0
        %569 = vmatpush1.msra.mxu0 0.0
        %570 = vmatprep.subr.mxu0 0.0
        %571 = vmatpush1.msra.mxu0 0.0
        %572 = vmatprep.subr.mxu0 0.0
        %573 = vmatpush1.msra.mxu0 0.0
        %574 = vmatprep.subr.mxu0 0.0
        %575 = vmatpush1.msra.mxu0 0.0
        %576 = vmatprep.subr.mxu0 0.0
        %577 = vmatpush1.msra.mxu0 0.0
        %578 = vmatprep.subr.mxu0 0.0
        %579 = vmatpush1.msra.mxu0 0.0
        %580 = vmatprep.subr.mxu0 0.0
        %581 = vmatpush1.msra.mxu0 0.0
        %582 = vmatprep.subr.mxu0 0.0
        %583 = vmatpush1.msra.mxu0 0.0
        %584 = vmatprep.subr.mxu0 0.0
        %585 = vmatpush1.msra.mxu0 0.0
        %586 = vmatprep.subr.mxu0 0.0
        %587 = vmatpush1.msra.mxu0 0.0
        %588 = vmatprep.subr.mxu0 0.0
        %589 = vmatpush1.msra.mxu0 0.0
        %590 = vmatprep.subr.mxu0 0.0
        %591 = vmatpush1.msra.mxu0 0.0
        %592 = vmatprep.subr.mxu0 0.0
        %593 = vmatpush1.msra.mxu0 0.0
        %594 = vmatprep.subr.mxu0 0.0
        %595 = vmatpush1.msra.mxu0 0.0
        %596 = vmatprep.subr.mxu0 0.0
        %597 = vmatpush1.msra.mxu0 0.0
        %598 = vmatprep.subr.mxu0 0.0
        %599 = vmatpush1.msra.mxu0 0.0
        %600 = vmatprep.subr.mxu0 0.0
        %601 = vmatpush1.msra.mxu0 0.0
        %602 = vmatprep.subr.mxu0 0.0
        %603 = vmatpush1.msra.mxu0 0.0
        %604 = vmatprep.mubr.f32.mxu0 0.0
        %605 = vmatmul.mubr.f32.gmra.mrb[0].mxu0 %v538
        %v606 = vpop.f32.mrb[0].mxu0
        %v607 = vadd.f32 0.0, %v606
        %v608 = vpop.f32.mrb[0].mxu0
        %v609 = vadd.f32 0.0, %v608
        %610 = vdwg.mxu0
        %611 = vmatprep.subr.mxu0 %v531
        %612 = vmatpush1.msra.mxu0 %v530
        %613 = vmatprep.subr.mxu0 %v535
        %614 = vmatpush1.msra.mxu0 %v534
        %615 = vmatprep.subr.mxu0 0.0
        %616 = vmatpush1.msra.mxu0 0.0
        %617 = vmatprep.subr.mxu0 0.0
        %618 = vmatpush1.msra.mxu0 0.0
        %619 = vmatprep.subr.mxu0 0.0
        %620 = vmatpush1.msra.mxu0 0.0
        %621 = vmatprep.subr.mxu0 0.0
        %622 = vmatpush1.msra.mxu0 0.0
        %623 = vmatprep.subr.mxu0 0.0
        %624 = vmatpush1.msra.mxu0 0.0
        %625 = vmatprep.subr.mxu0 0.0
        %626 = vmatpush1.msra.mxu0 0.0
        %627 = vmatprep.subr.mxu0 0.0
        %628 = vmatpush1.msra.mxu0 0.0
        %629 = vmatprep.subr.mxu0 0.0
        %630 = vmatpush1.msra.mxu0 0.0
        %631 = vmatprep.subr.mxu0 0.0
        %632 = vmatpush1.msra.mxu0 0.0
        %633 = vmatprep.subr.mxu0 0.0
        %634 = vmatpush1.msra.mxu0 0.0
        %635 = vmatprep.subr.mxu0 0.0
        %636 = vmatpush1.msra.mxu0 0.0
        %637 = vmatprep.subr.mxu0 0.0
        %638 = vmatpush1.msra.mxu0 0.0
        %639 = vmatprep.subr.mxu0 0.0
        %640 = vmatpush1.msra.mxu0 0.0
        %641 = vmatprep.subr.mxu0 0.0
        %642 = vmatpush1.msra.mxu0 0.0
        %643 = vmatprep.subr.mxu0 0.0
        %644 = vmatpush1.msra.mxu0 0.0
        %645 = vmatprep.subr.mxu0 0.0
        %646 = vmatpush1.msra.mxu0 0.0
        %647 = vmatprep.subr.mxu0 0.0
        %648 = vmatpush1.msra.mxu0 0.0
        %649 = vmatprep.subr.mxu0 0.0
        %650 = vmatpush1.msra.mxu0 0.0
        %651 = vmatprep.subr.mxu0 0.0
        %652 = vmatpush1.msra.mxu0 0.0
        %653 = vmatprep.subr.mxu0 0.0
        %654 = vmatpush1.msra.mxu0 0.0
        %655 = vmatprep.subr.mxu0 0.0
        %656 = vmatpush1.msra.mxu0 0.0
        %657 = vmatprep.subr.mxu0 0.0
        %658 = vmatpush1.msra.mxu0 0.0
        %659 = vmatprep.subr.mxu0 0.0
        %660 = vmatpush1.msra.mxu0 0.0
        %661 = vmatprep.subr.mxu0 0.0
        %662 = vmatpush1.msra.mxu0 0.0
        %663 = vmatprep.subr.mxu0 0.0
        %664 = vmatpush1.msra.mxu0 0.0
        %665 = vmatprep.subr.mxu0 0.0
        %666 = vmatpush1.msra.mxu0 0.0
        %667 = vmatprep.subr.mxu0 0.0
        %668 = vmatpush1.msra.mxu0 0.0
        %669 = vmatprep.subr.mxu0 0.0
        %670 = vmatpush1.msra.mxu0 0.0
        %671 = vmatprep.subr.mxu0 0.0
        %672 = vmatpush1.msra.mxu0 0.0
        %673 = vmatprep.subr.mxu0 0.0
        %674 = vmatpush1.msra.mxu0 0.0
        %675 = vmatprep.mubr.f32.mxu0 0.0
        %676 = vmatmul.mubr.f32.gmra.mrb[0].mxu0 %v538
        %v677 = vpop.f32.mrb[0].mxu0
        %v678 = vadd.f32 0.0, %v677
        %v679 = vpop.f32.mrb[0].mxu0
        %v680 = vadd.f32 0.0, %v679
        %681 = vdwg.mxu0
        %v682 = vmul.f32 %v452, %v607
        %v683 = vmul.f32 %v454, %v609
        %v684 = vmul.f32 %v523, %v678
        %v685 = vmul.f32 %v525, %v680
        %v686 = vld [vmem:[#allocation10] sm:$0xff]
        %v687 = vld [vmem:[#allocation10 + $0x8] sm:$0xff]
        %v688 = vld [vmem:[#allocation10 + $0x10] sm:$0xff]
        %v689 = vld [vmem:[#allocation10 + $0x18] sm:$0xff]
        %v690 = vld [vmem:[#allocation10 + $0x20] sm:$0xff]
        %v691 = vld [vmem:[#allocation10 + $0x28] sm:$0xff]
        %v692 = vld [vmem:[#allocation10 + $0x30] sm:$0xff]
        %v693 = vld [vmem:[#allocation10 + $0x38] sm:$0xff]
        %v694 = vld [vmem:[#allocation10 + $0x40] sm:$0xff]
        %v695 = vld [vmem:[#allocation10 + $0x48] sm:$0xff]
        %v696 = vld [vmem:[#allocation10 + $0x50] sm:$0xff]
        %v697 = vld [vmem:[#allocation10 + $0x58] sm:$0xff]
        %v698 = vld [vmem:[#allocation10 + $0x60] sm:$0xff]
        %v699 = vld [vmem:[#allocation10 + $0x68] sm:$0xff]
        %v700 = vld [vmem:[#allocation10 + $0x70] sm:$0xff]
        %v701 = vld [vmem:[#allocation10 + $0x78] sm:$0xff]
        %v702 = vld [vmem:[#allocation10 + $0x80] sm:$0xff]
        %v703 = vld [vmem:[#allocation10 + $0x88] sm:$0xff]
        %v704 = vld [vmem:[#allocation10 + $0x90] sm:$0xff]
        %v705 = vld [vmem:[#allocation10 + $0x98] sm:$0xff]
        %v706 = vld [vmem:[#allocation10 + $0xa0] sm:$0xff]
        %v707 = vld [vmem:[#allocation10 + $0xa8] sm:$0xff]
        %v708 = vld [vmem:[#allocation10 + $0xb0] sm:$0xff]
        %v709 = vld [vmem:[#allocation10 + $0xb8] sm:$0xff]
        %v710 = vld [vmem:[#allocation10 + $0xc0] sm:$0xff]
        %v711 = vld [vmem:[#allocation10 + $0xc8] sm:$0xff]
        %v712 = vld [vmem:[#allocation10 + $0xd0] sm:$0xff]
        %v713 = vld [vmem:[#allocation10 + $0xd8] sm:$0xff]
        %v714 = vld [vmem:[#allocation10 + $0xe0] sm:$0xff]
        %v715 = vld [vmem:[#allocation10 + $0xe8] sm:$0xff]
        %v716 = vld [vmem:[#allocation10 + $0xf0] sm:$0xff]
        %v717 = vld [vmem:[#allocation10 + $0xf8] sm:$0xff]
        %v718 = vld [vmem:[#allocation10 + $0x100] sm:$0xff]
        %v719 = vld [vmem:[#allocation10 + $0x108] sm:$0xff]
        %v720 = vld [vmem:[#allocation10 + $0x110] sm:$0xff]
        %v721 = vld [vmem:[#allocation10 + $0x118] sm:$0xff]
        %v722 = vld [vmem:[#allocation10 + $0x120] sm:$0xff]
        %v723 = vld [vmem:[#allocation10 + $0x128] sm:$0xff]
        %v724 = vld [vmem:[#allocation10 + $0x130] sm:$0xff]
        %v725 = vld [vmem:[#allocation10 + $0x138] sm:$0xff]
        %v726 = vld [vmem:[#allocation10 + $0x140] sm:$0xff]
        %v727 = vld [vmem:[#allocation10 + $0x148] sm:$0xff]
        %v728 = vld [vmem:[#allocation10 + $0x150] sm:$0xff]
        %v729 = vld [vmem:[#allocation10 + $0x158] sm:$0xff]
        %v730 = vld [vmem:[#allocation10 + $0x160] sm:$0xff]
        %v731 = vld [vmem:[#allocation10 + $0x168] sm:$0xff]
        %v732 = vld [vmem:[#allocation10 + $0x170] sm:$0xff]
        %v733 = vld [vmem:[#allocation10 + $0x178] sm:$0xff]
        %v734 = vld [vmem:[#allocation10 + $0x180] sm:$0xff]
        %v735 = vld [vmem:[#allocation10 + $0x188] sm:$0xff]
        %v736 = vld [vmem:[#allocation10 + $0x190] sm:$0xff]
        %v737 = vld [vmem:[#allocation10 + $0x198] sm:$0xff]
        %v738 = vld [vmem:[#allocation10 + $0x1a0] sm:$0xff]
        %v739 = vld [vmem:[#allocation10 + $0x1a8] sm:$0xff]
        %v740 = vld [vmem:[#allocation10 + $0x1b0] sm:$0xff]
        %v741 = vld [vmem:[#allocation10 + $0x1b8] sm:$0xff]
        %v742 = vld [vmem:[#allocation10 + $0x1c0] sm:$0xff]
        %v743 = vld [vmem:[#allocation10 + $0x1c8] sm:$0xff]
        %v744 = vld [vmem:[#allocation10 + $0x1d0] sm:$0xff]
        %v745 = vld [vmem:[#allocation10 + $0x1d8] sm:$0xff]
        %v746 = vld [vmem:[#allocation10 + $0x1e0] sm:$0xff]
        %v747 = vld [vmem:[#allocation10 + $0x1e8] sm:$0xff]
        %v748 = vld [vmem:[#allocation10 + $0x1f0] sm:$0xff]
        %v749 = vld [vmem:[#allocation10 + $0x1f8] sm:$0xff]
        %750 = vmatprep.subr.mxu0 0.0
        %751 = vmatpush1.msra.mxu0 %v686
        %752 = vmatprep.subr.mxu0 0.0
        %753 = vmatpush1.msra.mxu0 %v687
        %754 = vmatprep.subr.mxu0 0.0
        %755 = vmatpush1.msra.mxu0 %v688
        %756 = vmatprep.subr.mxu0 0.0
        %757 = vmatpush1.msra.mxu0 %v689
        %758 = vmatprep.subr.mxu0 0.0
        %759 = vmatpush1.msra.mxu0 %v690
        %760 = vmatprep.subr.mxu0 0.0
        %761 = vmatpush1.msra.mxu0 %v691
        %762 = vmatprep.subr.mxu0 0.0
        %763 = vmatpush1.msra.mxu0 %v692
        %764 = vmatprep.subr.mxu0 0.0
        %765 = vmatpush1.msra.mxu0 %v693
        %766 = vmatprep.subr.mxu0 0.0
        %767 = vmatpush1.msra.mxu0 %v694
        %768 = vmatprep.subr.mxu0 0.0
        %769 = vmatpush1.msra.mxu0 %v695
        %770 = vmatprep.subr.mxu0 0.0
        %771 = vmatpush1.msra.mxu0 %v696
        %772 = vmatprep.subr.mxu0 0.0
        %773 = vmatpush1.msra.mxu0 %v697
        %774 = vmatprep.subr.mxu0 0.0
        %775 = vmatpush1.msra.mxu0 %v698
        %776 = vmatprep.subr.mxu0 0.0
        %777 = vmatpush1.msra.mxu0 %v699
        %778 = vmatprep.subr.mxu0 0.0
        %779 = vmatpush1.msra.mxu0 %v700
        %780 = vmatprep.subr.mxu0 0.0
        %781 = vmatpush1.msra.mxu0 %v701
        %782 = vmatprep.subr.mxu0 0.0
        %783 = vmatpush1.msra.mxu0 %v702
        %784 = vmatprep.subr.mxu0 0.0
        %785 = vmatpush1.msra.mxu0 %v703
        %786 = vmatprep.subr.mxu0 0.0
        %787 = vmatpush1.msra.mxu0 %v704
        %788 = vmatprep.subr.mxu0 0.0
        %789 = vmatpush1.msra.mxu0 %v705
        %790 = vmatprep.subr.mxu0 0.0
        %791 = vmatpush1.msra.mxu0 %v706
        %792 = vmatprep.subr.mxu0 0.0
        %793 = vmatpush1.msra.mxu0 %v707
        %794 = vmatprep.subr.mxu0 0.0
        %795 = vmatpush1.msra.mxu0 %v708
        %796 = vmatprep.subr.mxu0 0.0
        %797 = vmatpush1.msra.mxu0 %v709
        %798 = vmatprep.subr.mxu0 0.0
        %799 = vmatpush1.msra.mxu0 %v710
        %800 = vmatprep.subr.mxu0 0.0
        %801 = vmatpush1.msra.mxu0 %v711
        %802 = vmatprep.subr.mxu0 0.0
        %803 = vmatpush1.msra.mxu0 %v712
        %804 = vmatprep.subr.mxu0 0.0
        %805 = vmatpush1.msra.mxu0 %v713
        %806 = vmatprep.subr.mxu0 0.0
        %807 = vmatpush1.msra.mxu0 %v714
        %808 = vmatprep.subr.mxu0 0.0
        %809 = vmatpush1.msra.mxu0 %v715
        %810 = vmatprep.subr.mxu0 0.0
        %811 = vmatpush1.msra.mxu0 %v716
        %812 = vmatprep.subr.mxu0 0.0
        %813 = vmatpush1.msra.mxu0 %v717
        %814 = vmatprep.mubr.f32.mxu0 %v683
        %815 = vmatmul.mubr.f32.gmra.mrb[0].mxu0 %v682
        %v816 = vpop.f32.mrb[0].mxu0
        %v817 = vadd.f32 0.0, %v816
        %v818 = vpop.f32.mrb[0].mxu0
        %819 = vdwg.mxu0
        %820 = vmatprep.subr.mxu0 0.0
        %821 = vmatpush1.msra.mxu0 %v718
        %822 = vmatprep.subr.mxu0 0.0
        %823 = vmatpush1.msra.mxu0 %v719
        %824 = vmatprep.subr.mxu0 0.0
        %825 = vmatpush1.msra.mxu0 %v720
        %826 = vmatprep.subr.mxu0 0.0
        %827 = vmatpush1.msra.mxu0 %v721
        %828 = vmatprep.subr.mxu0 0.0
        %829 = vmatpush1.msra.mxu0 %v722
        %830 = vmatprep.subr.mxu0 0.0
        %831 = vmatpush1.msra.mxu0 %v723
        %832 = vmatprep.subr.mxu0 0.0
        %833 = vmatpush1.msra.mxu0 %v724
        %834 = vmatprep.subr.mxu0 0.0
        %835 = vmatpush1.msra.mxu0 %v725
        %836 = vmatprep.subr.mxu0 0.0
        %837 = vmatpush1.msra.mxu0 %v726
        %838 = vmatprep.subr.mxu0 0.0
        %839 = vmatpush1.msra.mxu0 %v727
        %840 = vmatprep.subr.mxu0 0.0
        %841 = vmatpush1.msra.mxu0 %v728
        %842 = vmatprep.subr.mxu0 0.0
        %843 = vmatpush1.msra.mxu0 %v729
        %844 = vmatprep.subr.mxu0 0.0
        %845 = vmatpush1.msra.mxu0 %v730
        %846 = vmatprep.subr.mxu0 0.0
        %847 = vmatpush1.msra.mxu0 %v731
        %848 = vmatprep.subr.mxu0 0.0
        %849 = vmatpush1.msra.mxu0 %v732
        %850 = vmatprep.subr.mxu0 0.0
        %851 = vmatpush1.msra.mxu0 %v733
        %852 = vmatprep.subr.mxu0 0.0
        %853 = vmatpush1.msra.mxu0 %v734
        %854 = vmatprep.subr.mxu0 0.0
        %855 = vmatpush1.msra.mxu0 %v735
        %856 = vmatprep.subr.mxu0 0.0
        %857 = vmatpush1.msra.mxu0 %v736
        %858 = vmatprep.subr.mxu0 0.0
        %859 = vmatpush1.msra.mxu0 %v737
        %860 = vmatprep.subr.mxu0 0.0
        %861 = vmatpush1.msra.mxu0 %v738
        %862 = vmatprep.subr.mxu0 0.0
        %863 = vmatpush1.msra.mxu0 %v739
        %864 = vmatprep.subr.mxu0 0.0
        %865 = vmatpush1.msra.mxu0 %v740
        %866 = vmatprep.subr.mxu0 0.0
        %867 = vmatpush1.msra.mxu0 %v741
        %868 = vmatprep.subr.mxu0 0.0
        %869 = vmatpush1.msra.mxu0 %v742
        %870 = vmatprep.subr.mxu0 0.0
        %871 = vmatpush1.msra.mxu0 %v743
        %872 = vmatprep.subr.mxu0 0.0
        %873 = vmatpush1.msra.mxu0 %v744
        %874 = vmatprep.subr.mxu0 0.0
        %875 = vmatpush1.msra.mxu0 %v745
        %876 = vmatprep.subr.mxu0 0.0
        %877 = vmatpush1.msra.mxu0 %v746
        %878 = vmatprep.subr.mxu0 0.0
        %879 = vmatpush1.msra.mxu0 %v747
        %880 = vmatprep.subr.mxu0 0.0
        %881 = vmatpush1.msra.mxu0 %v748
        %882 = vmatprep.subr.mxu0 0.0
        %883 = vmatpush1.msra.mxu0 %v749
        %884 = vmatprep.mubr.f32.mxu0 %v685
        %885 = vmatmul.mubr.f32.gmra.mrb[0].mxu0 %v684
        %v886 = vpop.f32.mrb[0].mxu0
        %v887 = vadd.f32 %v817, %v886
        %v888 = vpop.f32.mrb[0].mxu0
        %889 = vdwg.mxu0
        %890 = vst [vmem:[%s319] sm:$0xff] %v887
        %s891 = sand.u32 %s149, 1
        %s892 = scalar_lea.sflag [#allocation4], %s891
        %s893 = sand.u32 %s149, 1
        %s894 = smul.addr %s893, 8
        %s895 = scalar_lea.vmem [#allocation11], %s894
        // Predicated region
        $region61: #{tpu_custom_call.1} parent=39 // pred_check
          %p896 = pneg %p159
        $region62: #{tpu_custom_call.1} parent=39 // pred_check_branch
          %898 = sbr.rel (%p896) target = $region64
        $region63: #{tpu_custom_call.1} parent=39 // pred_region
          %s900 = ssub.s32 128, 128
          %901 = vsyncadd %s892, %s900
          %s902 = smul.addr %s26, 128
          %s903 = scalar_lea.hbm %s5, %s902
          %s905 = sshll.u32 %s895, 4
          %s906 = int_to_ptr.vmem [resolvable:$true] %s905
          %908 = dma.vmem_to_hbm [thread:$0]  %s906, 128, %s903, %s892
        $region64: #{tpu_custom_call.1} parent=39 // pred_fallthru
          _
      $region40: #{tpu_custom_call.1} parent=5 // pred_fallthru
        _
      %p909 = scmp.le.s32.totalorder 2, %s21
      // Predicated region
      $region65: #{tpu_custom_call.1} parent=5 // pred_check
        %p910 = pneg %p909
      $region66: #{tpu_custom_call.1} parent=5 // pred_check_branch
        %912 = sbr.rel (%p910) target = $region68
      $region67: #{tpu_custom_call.1} parent=5 // pred_region
        %s913 = ssub.s32 %s21, 2
        // Predicated region
        $region69: #{tpu_custom_call.1} parent=67 // pred_check
          %p914 = pneg %p165
        $region70: #{tpu_custom_call.1} parent=67 // pred_check_branch
          %916 = sbr.rel (%p914) target = $region72
        $region71: #{tpu_custom_call.1} parent=67 // pred_region
          %s917 = sand.u32 %s150, 1
          %s918 = scalar_lea.sflag [#allocation4], %s917
          %s919 = sand.u32 %s150, 1
          %s920 = smul.addr %s919, 8
          %s921 = scalar_lea.vmem [#allocation11], %s920
          %922 = dma.done %s918, 128
        $region72: #{tpu_custom_call.1} parent=67 // pred_fallthru
          _
      $region68: #{tpu_custom_call.1} parent=5 // pred_fallthru
        _
    $region6: #{tpu_custom_call.1} parent=1 // loop_footer
      %s25 = sadd.s32 1, %s21
    $region7: #{tpu_custom_call.1} parent=1 // loop_footer_branch
      %20 = sbr.rel target = $region3
    $region8: #{tpu_custom_call.1} parent=1 // loop_exit
      _
    %923 = vsyncpa [#allocation3], 1
    %s924 = scalar_lea.sflag [#allocation3], 1
    %925 = vsyncpa %s924, 1
    %926 = vsyncpa [#allocation6], 1
    %s927 = scalar_lea.sflag [#allocation6], 1
    %928 = vsyncpa %s927, 1
    %929 = vsyncpa [#allocation9], 1
    %930 = vsyncpa [#allocation4], 1
    %s931 = scalar_lea.sflag [#allocation4], 1
    %932 = vsyncpa %s931, 1

</llo_original>
